<compile_context>
chip_gen: v7x
topology: tpu7x:2x2x1
jax: 0.10.0
libtpu: 0.0.40
codegen_flags: <defaults>
</compile_context>

<pallas_src>
import jax
import jax.numpy as jnp
from jax.experimental import pallas as pl
from jax.experimental.pallas import tpu as pltpu


def _round_up(v, m):
    return (v + m - 1) // m * m


def _concat_squash_kernel(x_ref, wl_ref, gate_ref, fbias_ref, out_ref):
    # x_ref:     (1, TN, dim_in)       compute dtype (bf16 or f32)
    # wl_ref:    (dim_in, dim_out_p)   compute dtype (resident across the grid)
    # gate_ref:  (1, 1, dim_out_p)     f32  sigmoid(ctx @ Wg + bg), padded
    # fbias_ref: (1, 1, dim_out_p)     f32  b_layer * gate + ctx @ Wb, padded
    # out_ref:   (1, TN, dim_out_p)
    y = jnp.dot(x_ref[0], wl_ref[...], preferred_element_type=jnp.float32)
    out_ref[0] = (y * gate_ref[0] + fbias_ref[0]).astype(out_ref.dtype)


def _choose_tile_n(n, dim_in, dim_out_p, in_bytes, out_bytes, budget_bytes):
    """Largest N-tile (multiple of 8, <=512) whose double-buffered tiles fit the budget."""
    tn = 512 if n >= 512 else _round_up(n, 8)

    def tile_bytes(t):
        # double-buffered x tile (compute dtype) + out tile (output dtype)
        return 2 * t * (dim_in * in_bytes + dim_out_p * out_bytes)

    while tn > 8 and tile_bytes(tn) > budget_bytes:
        tn = max(8, tn // 2)
    return tn


def concat_squash_linear(context, x, params, *, compute_dtype=jnp.bfloat16):
    """context: (B, 1+dim_c) f32, x: (B, N, dim_in) f32  ->  (B, N, dim_out) f32."""
    wl, bl, wg, bg, wb = (
        params["w_layer"], params["b_layer"],
        params["w_gate"], params["b_gate"], params["w_bias"],
    )
    B, N, dim_in = x.shape
    dim_out = wl.shape[1]

    # --- hoisted hyper-network: one tiny (B,C)x(C,2*dim_out) f32 matmul in JAX ---
    hyper = context @ jnp.concatenate([wg, wb], axis=1)          # (B, 2*dim_out)
    gate = jax.nn.sigmoid(hyper[:, :dim_out] + bg)               # (B, dim_out)
    hbias = hyper[:, dim_out:]                                   # (B, dim_out)
    fused_bias = bl * gate + hbias                               # folds b_layer in

    # --- lane-dense output width + N tiling sized to a conservative VMEM budget ---
    dim_out_p = _round_up(dim_out, 128)
    in_bytes = jnp.dtype(compute_dtype).itemsize
    out_bytes = jnp.dtype(x.dtype).itemsize
    tn = _choose_tile_n(N, dim_in, dim_out_p, in_bytes, out_bytes,
                        budget_bytes=24 << 20)
    n_tiles = pl.cdiv(N, tn)
    n_pad = n_tiles * tn

    pad_o = dim_out_p - dim_out
    x_p = jnp.pad(x, ((0, 0), (0, n_pad - N), (0, 0))).astype(compute_dtype)
    wl_p = jnp.pad(wl, ((0, 0), (0, pad_o))).astype(compute_dtype)
    gate_p = jnp.pad(gate, ((0, 0), (0, pad_o))).astype(jnp.float32).reshape(B, 1, dim_out_p)
    fbias_p = jnp.pad(fused_bias, ((0, 0), (0, pad_o))).astype(jnp.float32).reshape(B, 1, dim_out_p)

    out = pl.pallas_call(
        _concat_squash_kernel,
        out_shape=jax.ShapeDtypeStruct((B, n_pad, dim_out_p), x.dtype),
        grid=(B, n_tiles),
        in_specs=[
            pl.BlockSpec((1, tn, dim_in), lambda b, n: (b, n, 0)),       # x tile
            pl.BlockSpec((dim_in, dim_out_p), lambda b, n: (0, 0)),      # W_layer^T
            pl.BlockSpec((1, 1, dim_out_p), lambda b, n: (b, 0, 0)),     # gate row
            pl.BlockSpec((1, 1, dim_out_p), lambda b, n: (b, 0, 0)),     # fused bias row
        ],
        out_specs=pl.BlockSpec((1, tn, dim_out_p), lambda b, n: (b, n, 0)),
        compiler_params=pltpu.CompilerParams(
            dimension_semantics=("parallel", "parallel"),
            vmem_limit_bytes=48 << 20,   # safe on v7x (64 MiB) and v5e/v6e (128 MiB)
        ),
    )(x_p, wl_p, gate_p, fbias_p)

    return out[:, :N, :dim_out]


def init_params(key, dim_in, dim_out, dim_c):
    """Deterministic xavier-uniform init matching the torch module's shapes."""
    k1, k2, k3, k4, k5 = jax.random.split(key, 5)

    def xavier(k, fan_in, fan_out):
        bound = jnp.sqrt(6.0 / (fan_in + fan_out))
        # stored transposed: (in_features, out_features)
        return jax.random.uniform(k, (fan_in, fan_out), jnp.float32, -bound, bound)

    c = 1 + dim_c
    return {
        "w_layer": xavier(k1, dim_in, dim_out),
        "b_layer": jax.random.uniform(
            k2, (dim_out,), jnp.float32, -1.0 / jnp.sqrt(dim_in), 1.0 / jnp.sqrt(dim_in)
        ),
        "w_gate": xavier(k3, c, dim_out),
        "b_gate": jax.random.uniform(
            k4, (dim_out,), jnp.float32, -1.0 / jnp.sqrt(c), 1.0 / jnp.sqrt(c)
        ),
        "w_bias": xavier(k5, c, dim_out),   # hyper_bias has no bias term
    }


def reference(context, x, p):
    gate = jax.nn.sigmoid(context @ p["w_gate"] + p["b_gate"])[:, None, :]
    bias = (context @ p["w_bias"])[:, None, :]
    return (x @ p["w_layer"] + p["b_layer"]) * gate + bias


if __name__ == "__main__":
    B, N, dim_in, dim_out, dim_c = 2, 8, 32, 32, 3

    key = jax.random.PRNGKey(0)
    kp, kc, kx = jax.random.split(key, 3)
    params = init_params(kp, dim_in, dim_out, dim_c)

    context = jax.random.normal(kc, (B, 1 + dim_c), jnp.float32)
    x = jax.random.normal(kx, (B, N, dim_in), jnp.float32)

    ref = reference(context, x, params)

    # Exact-f32 MXU path: must match the pure-JAX reference tightly.
    out_f32 = jax.block_until_ready(
        concat_squash_linear(context, x, params, compute_dtype=jnp.float32))
    assert out_f32.shape == (B, N, dim_out)
    assert jnp.allclose(out_f32, ref, atol=1e-5, rtol=1e-5), "f32 mismatch vs reference"

    # Default bf16-operand / f32-accumulate path (perf path on v5e/v6e/v7x).
    out_bf16 = jax.block_until_ready(concat_squash_linear(context, x, params))
    assert out_bf16.shape == (B, N, dim_out)
    assert jnp.allclose(out_bf16, ref, atol=5e-2, rtol=5e-2), "bf16 mismatch vs reference"

    print("KERNEL_OK")
</pallas_src>

<mosaic_0001>
module attributes {stable_mosaic.version = 11 : i64} {
  func.func @_concat_squash_kernel(%arg0: i32, %arg1: i32, %arg2: memref<1x8x32xf32, #tpu.memory_space<vmem>>, %arg3: memref<32x128xf32, #tpu.memory_space<vmem>>, %arg4: memref<1x1x128xf32, #tpu.memory_space<vmem>>, %arg5: memref<1x1x128xf32, #tpu.memory_space<vmem>>, %arg6: memref<1x8x128xf32, #tpu.memory_space<vmem>>) attributes {dimension_semantics = [#tpu.dimension_semantics<parallel>, #tpu.dimension_semantics<parallel>], iteration_bounds = array<i64: 2, 1>, scalar_prefetch = 0 : i64, scratch_operands = 0 : i64, tpu.core_type = #tpu.core_type<tc>, window_params = [{transform_indices = @transform_0, window_bounds = array<i64: 1, 8, 32>}, {pipeline_mode = #tpu.pipeline_mode<synchronous>, transform_indices = @transform_1, window_bounds = array<i64: 32, 128>}, {transform_indices = @transform_2, window_bounds = array<i64: 1, 1, 128>}, {transform_indices = @transform_3, window_bounds = array<i64: 1, 1, 128>}, {transform_indices = @transform_4, window_bounds = array<i64: 1, 8, 128>}]} {
    %c0 = arith.constant 0 : index
    %c0_0 = arith.constant 0 : index
    %c0_1 = arith.constant 0 : index
    %0 = vector.load %arg2[%c0, %c0_0, %c0_1] : memref<1x8x32xf32, #tpu.memory_space<vmem>>, vector<1x8x32xf32>
    %1 = vector.shape_cast %0 : vector<1x8x32xf32> to vector<8x32xf32>
    %c0_2 = arith.constant 0 : index
    %c0_3 = arith.constant 0 : index
    %2 = vector.load %arg3[%c0_2, %c0_3] : memref<32x128xf32, #tpu.memory_space<vmem>>, vector<32x128xf32>
    %cst = arith.constant dense<0.000000e+00> : vector<8x128xf32>
    %3 = tpu.matmul %1, %2, %cst {dimension_numbers = #tpu.dot_dimension_numbers<[1], [0], [0], [1], [0, 0, 1, 1], [], []>} : vector<8x32xf32>, vector<32x128xf32>, vector<8x128xf32> -> vector<8x128xf32>
    %c0_4 = arith.constant 0 : index
    %c0_5 = arith.constant 0 : index
    %c0_6 = arith.constant 0 : index
    %4 = vector.load %arg4[%c0_4, %c0_5, %c0_6] : memref<1x1x128xf32, #tpu.memory_space<vmem>>, vector<1x1x128xf32>
    %5 = vector.shape_cast %4 : vector<1x1x128xf32> to vector<1x128xf32>
    %6 = vector.broadcast %5 : vector<1x128xf32> to vector<8x128xf32>
    %7 = arith.mulf %3, %6 : vector<8x128xf32>
    %c0_7 = arith.constant 0 : index
    %c0_8 = arith.constant 0 : index
    %c0_9 = arith.constant 0 : index
    %8 = vector.load %arg5[%c0_7, %c0_8, %c0_9] : memref<1x1x128xf32, #tpu.memory_space<vmem>>, vector<1x1x128xf32>
    %9 = vector.shape_cast %8 : vector<1x1x128xf32> to vector<1x128xf32>
    %10 = vector.broadcast %9 : vector<1x128xf32> to vector<8x128xf32>
    %11 = arith.addf %7, %10 : vector<8x128xf32>
    %c0_10 = arith.constant 0 : index
    %c0_11 = arith.constant 0 : index
    %c0_12 = arith.constant 0 : index
    %12 = vector.load %arg6[%c0_10, %c0_11, %c0_12] : memref<1x8x128xf32, #tpu.memory_space<vmem>>, vector<1x8x128xf32>
    %13 = vector.shape_cast %12 : vector<1x8x128xf32> to vector<8x128xf32>
    %14 = vector.shape_cast %11 : vector<8x128xf32> to vector<1x8x128xf32>
    tpu.vector_store %arg6[%c0_10, %c0_11, %c0_12], %14 {strides = array<i32>} : memref<1x8x128xf32, #tpu.memory_space<vmem>>, vector<1x8x128xf32>,
    return
  }
  func.func @transform_0(%arg0: i32, %arg1: i32) -> (i32, i32, i32) {
    %c0_i32 = arith.constant 0 : i32
    %c0_i32_0 = arith.constant 0 : i32
    return %arg0, %arg1, %c0_i32 : i32, i32, i32
  }
  func.func @transform_1(%arg0: i32, %arg1: i32) -> (i32, i32) {
    %c0_i32 = arith.constant 0 : i32
    %c0_i32_0 = arith.constant 0 : i32
    %c0_i32_1 = arith.constant 0 : i32
    return %c0_i32, %c0_i32_0 : i32, i32
  }
  func.func @transform_2(%arg0: i32, %arg1: i32) -> (i32, i32, i32) {
    %c0_i32 = arith.constant 0 : i32
    %c0_i32_0 = arith.constant 0 : i32
    %c0_i32_1 = arith.constant 0 : i32
    return %arg0, %c0_i32, %c0_i32_0 : i32, i32, i32
  }
  func.func @transform_3(%arg0: i32, %arg1: i32) -> (i32, i32, i32) {
    %c0_i32 = arith.constant 0 : i32
    %c0_i32_0 = arith.constant 0 : i32
    %c0_i32_1 = arith.constant 0 : i32
    return %arg0, %c0_i32, %c0_i32_0 : i32, i32, i32
  }
  func.func @transform_4(%arg0: i32, %arg1: i32) -> (i32, i32, i32) {
    %c0_i32 = arith.constant 0 : i32
    %c0_i32_0 = arith.constant 0 : i32
    return %arg0, %arg1, %c0_i32 : i32, i32, i32
  }
}

</mosaic_0001>

<llo_original>
// kernel: tpu_custom_call.1
$region0: #{tpu_custom_call.1}
  #allocation0 [shape = 'u32[]', space=smem, size = 0x4, offset = 0x4, fixed_abs, tag = 'smem constant byte address 0x4 - core index']
  #allocation1 [shape = 'u32[144,128]{1,0:T(1,128)}', space=vmem, size = 0x12000, scoped, tag = 'internal scratch']
  %s0 = inlined_call_operand.hbm [shape: f32[2,8,32], index: 0, kind: input, shape index: {}]
  %s1 = inlined_call_operand.hbm [shape: f32[32,128], index: 1, kind: input, shape index: {}]
  %s2 = inlined_call_operand.vmem [shape: f32[2,1,128], index: 2, kind: input, shape index: {}]
  %s3 = inlined_call_operand.vmem [shape: f32[2,1,128], index: 3, kind: input, shape index: {}]
  %s4 = inlined_call_operand.hbm [shape: f32[2,8,128], index: 4, kind: output, shape index: {}]
  %s5 = sld [smem:[#allocation0]]
  $region57: #{tpu_custom_call.1} parent=0
    _
  %s7 = ssub.s32 1, %s5
  %s8 = scalar_select 0, %s7, %s5
  $region1: #{tpu_custom_call.1} parent=0
    #allocation2 [shape = 'u8[8192]{0}', space=vmem, size = 0x2000, scoped, tag = 'input window, operand 0']
    #allocation3 [shape = 's32[2]{0}', space=sflag, size = 0x8, scoped, tag = 'scoped memory for tpu_custom_call.1']
    #allocation4 [shape = 's32[2]{0}', space=sflag, size = 0x8, scoped, tag = 'scoped memory for tpu_custom_call.1']
    #allocation5 [shape = 'u8[16384]{0}', space=vmem, size = 0x4000, scoped, tag = 'input window, operand 1, single buffered']
    #allocation6 [shape = 's32[1]{0}', space=sflag, size = 0x4, scoped, tag = 'scoped memory for tpu_custom_call.1']
    #allocation7 [shape = 'u8[8192]{0}', space=vmem, size = 0x2000, scoped, tag = 'output window, operand 0']
    %9 = vsyncpa [#allocation3], 0
    %s10 = scalar_lea.sflag [#allocation3], 1
    %11 = vsyncpa %s10, 0
    %12 = vsyncpa [#allocation6], 0
    %13 = vsyncpa [#allocation4], 0
    %s14 = scalar_lea.sflag [#allocation4], 1
    %15 = vsyncpa %s14, 0
    loop: start=0, step=1, limit=4
    $region2: #{tpu_custom_call.1} parent=1 // loop_pre_header
      _
    $region3: #{tpu_custom_call.1} parent=1 // loop_header
      %s17 = sphi 0, %s21
      %p18 = scmp.ge.s32.totalorder %s17, 4
      %s24 = sphi 0, %s36
      %s25 = sphi 0, %s32
      %s26 = sphi 0, %s24
      %s27 = sphi 0, %s25
      %s28 = sphi 0, %s26
      %s29 = sphi 0, %s27
      %s41 = sphi 0, %s43
      %s44 = sphi 0, %s41
      %s45 = sphi 0, %s44
      %s61 = sphi 0, %s45
      %s65 = sphi 0, %s65
      %s67 = sphi 0, %s65
      %s68 = sphi 0, %s67
      %s82 = sphi 0, %s68
      %s88 = sphi 0, %s90
      %s91 = sphi 0, %s88
      %s92 = sphi 0, %s91
      %s108 = sphi 0, %s92
      %s114 = sphi 0, %s116
      %s117 = sphi 0, %s114
      %s118 = sphi 0, %s117
      %s134 = sphi 0, %s118
      %s142 = sphi 0, %s144
      %s145 = sphi 0, %s142
      %s146 = sphi 0, %s145
      %s162 = sphi 0, %s146
    $region4: #{tpu_custom_call.1} parent=1 // loop_header_branch
      %20 = sbr.rel (%p18) target = $region8
    $region5: #{tpu_custom_call.1} parent=1 // loop_body
      %s22 = ssub.s32 %s17, 1
      %s23 = ssub.s32 %s17, 2
      %s30 = sadd.s32 1, %s25
      %p31 = scmp.ge.s32.totalorder %s30, 1
      %s32 = scalar_select %p31, 0, %s30
      %s33 = sadd.s32 1, %s24
      %s34 = scalar_select %p31, %s33, %s24
      %p35 = scmp.ge.s32.totalorder %s34, 2
      %s36 = scalar_select %p35, 0, %s34
      %s37 = ssub.s32 %s24, %s36
      %s38 = ssub.s32 %s25, %s32
      %s39 = sor.u32 %s37, %s38
      %p40 = scmp.eq.s32.totalorder %s39, 0
      %s42 = sadd.s32 %s41, 1
      %s43 = scalar_select %p40, %s41, %s42
      %p46 = pneg %p40
      %p47 = scmp.eq.s32.totalorder %s17, 1
      %p48 = por %p46, %p47
      %p49 = scmp.ne.s32.totalorder %s41, %s44
      %p50 = scmp.eq.s32.totalorder %s17, 0
      %p51 = por %p49, %p50
      %p52 = scmp.ne.s32.totalorder %s41, %s44
      %p53 = scmp.eq.s32.totalorder %s22, 1
      %p54 = por %p52, %p53
      %p55 = scmp.ne.s32.totalorder %s44, %s45
      %p56 = scmp.eq.s32.totalorder %s22, 0
      %p57 = por %p55, %p56
      %p58 = scmp.ne.s32.totalorder %s44, %s45
      %p59 = scmp.eq.s32.totalorder %s23, 1
      %p60 = por %p58, %p59
      %p62 = scmp.ne.s32.totalorder %s45, %s61
      %p63 = scmp.eq.s32.totalorder %s23, 0
      %p64 = por %p62, %p63
      %s66 = sadd.s32 %s65, 1
      %p69 = scmp.eq.s32.totalorder %s17, 1
      %p70 = scmp.ne.s32.totalorder %s65, %s67
      %p71 = scmp.eq.s32.totalorder %s17, 0
      %p72 = por %p70, %p71
      %p73 = scmp.ne.s32.totalorder %s65, %s67
      %p74 = scmp.eq.s32.totalorder %s22, 1
      %p75 = por %p73, %p74
      %p76 = scmp.ne.s32.totalorder %s67, %s68
      %p77 = scmp.eq.s32.totalorder %s22, 0
      %p78 = por %p76, %p77
      %p79 = scmp.ne.s32.totalorder %s67, %s68
      %p80 = scmp.eq.s32.totalorder %s23, 1
      %p81 = por %p79, %p80
      %p83 = scmp.ne.s32.totalorder %s68, %s82
      %p84 = scmp.eq.s32.totalorder %s23, 0
      %p85 = por %p83, %p84
      %s86 = ssub.s32 %s24, %s36
      %p87 = scmp.eq.s32.totalorder %s86, 0
      %s89 = sadd.s32 %s88, 1
      %s90 = scalar_select %p87, %s88, %s89
      %p93 = pneg %p87
      %p94 = scmp.eq.s32.totalorder %s17, 1
      %p95 = por %p93, %p94
      %p96 = scmp.ne.s32.totalorder %s88, %s91
      %p97 = scmp.eq.s32.totalorder %s17, 0
      %p98 = por %p96, %p97
      %p99 = scmp.ne.s32.totalorder %s88, %s91
      %p100 = scmp.eq.s32.totalorder %s22, 1
      %p101 = por %p99, %p100
      %p102 = scmp.ne.s32.totalorder %s91, %s92
      %p103 = scmp.eq.s32.totalorder %s22, 0
      %p104 = por %p102, %p103
      %p105 = scmp.ne.s32.totalorder %s91, %s92
      %p106 = scmp.eq.s32.totalorder %s23, 1
      %p107 = por %p105, %p106
      %p109 = scmp.ne.s32.totalorder %s92, %s108
      %p110 = scmp.eq.s32.totalorder %s23, 0
      %p111 = por %p109, %p110
      %s112 = ssub.s32 %s24, %s36
      %p113 = scmp.eq.s32.totalorder %s112, 0
      %s115 = sadd.s32 %s114, 1
      %s116 = scalar_select %p113, %s114, %s115
      %p119 = pneg %p113
      %p120 = scmp.eq.s32.totalorder %s17, 1
      %p121 = por %p119, %p120
      %p122 = scmp.ne.s32.totalorder %s114, %s117
      %p123 = scmp.eq.s32.totalorder %s17, 0
      %p124 = por %p122, %p123
      %p125 = scmp.ne.s32.totalorder %s114, %s117
      %p126 = scmp.eq.s32.totalorder %s22, 1
      %p127 = por %p125, %p126
      %p128 = scmp.ne.s32.totalorder %s117, %s118
      %p129 = scmp.eq.s32.totalorder %s22, 0
      %p130 = por %p128, %p129
      %p131 = scmp.ne.s32.totalorder %s117, %s118
      %p132 = scmp.eq.s32.totalorder %s23, 1
      %p133 = por %p131, %p132
      %p135 = scmp.ne.s32.totalorder %s118, %s134
      %p136 = scmp.eq.s32.totalorder %s23, 0
      %p137 = por %p135, %p136
      %s138 = ssub.s32 %s24, %s36
      %s139 = ssub.s32 %s25, %s32
      %s140 = sor.u32 %s138, %s139
      %p141 = scmp.eq.s32.totalorder %s140, 0
      %s143 = sadd.s32 %s142, 1
      %s144 = scalar_select %p141, %s142, %s143
      %p147 = pneg %p141
      %p148 = scmp.eq.s32.totalorder %s17, 1
      %p149 = por %p147, %p148
      %p150 = scmp.ne.s32.totalorder %s142, %s145
      %p151 = scmp.eq.s32.totalorder %s17, 0
      %p152 = por %p150, %p151
      %p153 = scmp.ne.s32.totalorder %s142, %s145
      %p154 = scmp.eq.s32.totalorder %s22, 1
      %p155 = por %p153, %p154
      %p156 = scmp.ne.s32.totalorder %s145, %s146
      %p157 = scmp.eq.s32.totalorder %s22, 0
      %p158 = por %p156, %p157
      %p159 = scmp.ne.s32.totalorder %s145, %s146
      %p160 = scmp.eq.s32.totalorder %s23, 1
      %p161 = por %p159, %p160
      %p163 = scmp.ne.s32.totalorder %s146, %s162
      %p164 = scmp.eq.s32.totalorder %s23, 0
      %p165 = por %p163, %p164
      %p166 = scmp.le.s32.totalorder 1, %s17
      %p167 = scmp.lt.s32.totalorder %s17, 3
      %p168 = pnand %p166, %p167
      %p169 = pneg %p168
      // Predicated region
      $region9: #{tpu_custom_call.1} parent=5 // pred_check
        _
      $region10: #{tpu_custom_call.1} parent=5 // pred_check_branch
        %171 = sbr.rel (%p168) target = $region12
      $region11: #{tpu_custom_call.1} parent=5 // pred_region
        %s172 = ssub.s32 %s17, 1
        // Predicated region
        $region13: #{tpu_custom_call.1} parent=11 // pred_check
          %p173 = pneg %p78
        $region14: #{tpu_custom_call.1} parent=11 // pred_check_branch
          %175 = sbr.rel (%p173) target = $region16
        $region15: #{tpu_custom_call.1} parent=11 // pred_region
          %s177 = ssub.s32 512, 512
          %178 = vsyncadd [#allocation6], %s177
          %s179 = sshll.u32 [#allocation5], 4
          %s180 = int_to_ptr.vmem [resolvable:$true] %s179
          %185 = dma.hbm_to_vmem [thread:$0]  %s1, 512, %s180, [#allocation6], 128, 128, 8
        $region16: #{tpu_custom_call.1} parent=11 // pred_fallthru
          _
      $region12: #{tpu_custom_call.1} parent=5 // pred_fallthru
        _
      %p186 = scmp.lt.s32.totalorder %s17, 2
      // Predicated region
      $region17: #{tpu_custom_call.1} parent=5 // pred_check
        %p187 = pneg %p186
      $region18: #{tpu_custom_call.1} parent=5 // pred_check_branch
        %189 = sbr.rel (%p187) target = $region20
      $region19: #{tpu_custom_call.1} parent=5 // pred_region
        // Predicated region
        $region21: #{tpu_custom_call.1} parent=19 // pred_check
          %p190 = pneg %p51
        $region22: #{tpu_custom_call.1} parent=19 // pred_check_branch
          %192 = sbr.rel (%p190) target = $region24
        $region23: #{tpu_custom_call.1} parent=19 // pred_region
          %s193 = sand.u32 %s41, 1
          %s194 = scalar_lea.sflag [#allocation3], %s193
          %s195 = sand.u32 %s41, 1
          %s196 = smul.addr %s195, 8
          %s197 = scalar_lea.vmem [#allocation2], %s196
          %s199 = ssub.s32 128, 128
          %200 = vsyncadd %s194, %s199
          %s201 = sadd.s32 %s25, %s24
          %s202 = smul.addr %s201, 128
          %s203 = scalar_lea.hbm %s0, %s202
          %s205 = sshll.u32 %s197, 4
          %s206 = int_to_ptr.vmem [resolvable:$true] %s205
          %208 = dma.hbm_to_vmem [thread:$0]  %s203, 128, %s206, %s194
        $region24: #{tpu_custom_call.1} parent=19 // pred_fallthru
          _
        // Predicated region
        $region25: #{tpu_custom_call.1} parent=19 // pred_check
          %p209 = pneg %p98
        $region26: #{tpu_custom_call.1} parent=19 // pred_check_branch
          %211 = sbr.rel (%p209) target = $region28
        $region27: #{tpu_custom_call.1} parent=19 // pred_region
          %p212 = scmp.lt.s32.totalorder %s24, 1
          %s213 = scalar_select %p212, %s24, 1
          %s214 = scalar_lea.vmem %s2, %s213
        $region28: #{tpu_custom_call.1} parent=19 // pred_fallthru
          _
        // Predicated region
        $region29: #{tpu_custom_call.1} parent=19 // pred_check
          %p215 = pneg %p124
        $region30: #{tpu_custom_call.1} parent=19 // pred_check_branch
          %217 = sbr.rel (%p215) target = $region32
        $region31: #{tpu_custom_call.1} parent=19 // pred_region
          %p218 = scmp.lt.s32.totalorder %s24, 1
          %s219 = scalar_select %p218, %s24, 1
          %s220 = scalar_lea.vmem %s3, %s219
        $region32: #{tpu_custom_call.1} parent=19 // pred_fallthru
          _
      $region20: #{tpu_custom_call.1} parent=5 // pred_fallthru
        _
      %p221 = scmp.le.s32.totalorder 1, %s17
      %p222 = scmp.lt.s32.totalorder %s17, 3
      %p223 = pnand %p221, %p222
      %p224 = pneg %p223
      // Predicated region
      $region33: #{tpu_custom_call.1} parent=5 // pred_check
        _
      $region34: #{tpu_custom_call.1} parent=5 // pred_check_branch
        %226 = sbr.rel (%p223) target = $region36
      $region35: #{tpu_custom_call.1} parent=5 // pred_region
        %s227 = ssub.s32 %s17, 1
        %s228 = sand.u32 %s44, 1
        %s229 = scalar_lea.sflag [#allocation3], %s228
        %s230 = sand.u32 %s44, 1
        %s231 = smul.addr %s230, 8
        %s232 = scalar_lea.vmem [#allocation2], %s231
        // Predicated region
        $region37: #{tpu_custom_call.1} parent=35 // pred_check
          %p233 = pneg %p57
        $region38: #{tpu_custom_call.1} parent=35 // pred_check_branch
          %235 = sbr.rel (%p233) target = $region40
        $region39: #{tpu_custom_call.1} parent=35 // pred_region
          %236 = dma.done %s229, 128
        $region40: #{tpu_custom_call.1} parent=35 // pred_fallthru
          _
        // Predicated region
        $region41: #{tpu_custom_call.1} parent=35 // pred_check
          %p237 = pneg %p78
        $region42: #{tpu_custom_call.1} parent=35 // pred_check_branch
          %239 = sbr.rel (%p237) target = $region44
        $region43: #{tpu_custom_call.1} parent=35 // pred_region
          %240 = dma.done [#allocation6], 512
        $region44: #{tpu_custom_call.1} parent=35 // pred_fallthru
          _
        %s241 = sand.u32 %s44, 1
        %s242 = scalar_lea.sflag [#allocation3], %s241
        %s243 = sand.u32 %s44, 1
        %s244 = smul.addr %s243, 8
        %s245 = scalar_lea.vmem [#allocation2], %s244
        %p246 = pneg %p57
        %p247 = pneg %p54
        %p248 = pneg %p78
        %p249 = pneg %p75
        %p250 = scmp.lt.s32.totalorder %s26, 1
        %s251 = scalar_select %p250, %s26, 1
        %s252 = scalar_lea.vmem %s2, %s251
        %p253 = pneg %p104
        %p254 = pneg %p101
        %p255 = scmp.lt.s32.totalorder %s26, 1
        %s256 = scalar_select %p255, %s26, 1
        %s257 = scalar_lea.vmem %s3, %s256
        %p258 = pneg %p130
        %p259 = pneg %p127
        %p260 = pneg %p158
        %p261 = pneg %p155
        %s262 = sand.u32 %s145, 1
        %s263 = scalar_lea.sflag [#allocation4], %s262
        %s264 = sand.u32 %s145, 1
        %s265 = smul.addr %s264, 8
        %s266 = scalar_lea.vmem [#allocation7], %s265
        %p267 = scmp.lt.s32.totalorder %s26, 1
        %s268 = scalar_select %p267, %s26, 1
        %s269 = scalar_lea.vmem %s2, %s268
        %p270 = scmp.lt.s32.totalorder %s26, 1
        %s271 = scalar_select %p270, %s26, 1
        %s272 = scalar_lea.vmem %s3, %s271
        %v273 = vld [vmem:[%s232] sm:$0xff]
        %v274 = vld [vmem:[#allocation5] sm:$0xff]
        %v275 = vld [vmem:[#allocation5 + $0x8] sm:$0xff]
        %v276 = vld [vmem:[#allocation5 + $0x10] sm:$0xff]
        %v277 = vld [vmem:[#allocation5 + $0x18] sm:$0xff]
        %vm278 = vcmask 261120
        %v280 = vsel %vm278, %v273, 0
        %282 = vmatprep.subr.mxu0 0.0
        %283 = vmatpush1.msra.mxu0 %v274
        %284 = vmatprep.subr.mxu0 0.0
        %285 = vmatpush1.msra.mxu0 %v275
        %286 = vmatprep.subr.mxu0 0.0
        %287 = vmatpush1.msra.mxu0 %v276
        %288 = vmatprep.subr.mxu0 0.0
        %289 = vmatpush1.msra.mxu0 %v277
        %290 = vmatprep.subr.mxu0 0.0
        %291 = vmatpush1.msra.mxu0 0.0
        %292 = vmatprep.subr.mxu0 0.0
        %293 = vmatpush1.msra.mxu0 0.0
        %294 = vmatprep.subr.mxu0 0.0
        %295 = vmatpush1.msra.mxu0 0.0
        %296 = vmatprep.subr.mxu0 0.0
        %297 = vmatpush1.msra.mxu0 0.0
        %298 = vmatprep.subr.mxu0 0.0
        %299 = vmatpush1.msra.mxu0 0.0
        %300 = vmatprep.subr.mxu0 0.0
        %301 = vmatpush1.msra.mxu0 0.0
        %302 = vmatprep.subr.mxu0 0.0
        %303 = vmatpush1.msra.mxu0 0.0
        %304 = vmatprep.subr.mxu0 0.0
        %305 = vmatpush1.msra.mxu0 0.0
        %306 = vmatprep.subr.mxu0 0.0
        %307 = vmatpush1.msra.mxu0 0.0
        %308 = vmatprep.subr.mxu0 0.0
        %309 = vmatpush1.msra.mxu0 0.0
        %310 = vmatprep.subr.mxu0 0.0
        %311 = vmatpush1.msra.mxu0 0.0
        %312 = vmatprep.subr.mxu0 0.0
        %313 = vmatpush1.msra.mxu0 0.0
        %314 = vmatprep.subr.mxu0 0.0
        %315 = vmatpush1.msra.mxu0 0.0
        %316 = vmatprep.subr.mxu0 0.0
        %317 = vmatpush1.msra.mxu0 0.0
        %318 = vmatprep.subr.mxu0 0.0
        %319 = vmatpush1.msra.mxu0 0.0
        %320 = vmatprep.subr.mxu0 0.0
        %321 = vmatpush1.msra.mxu0 0.0
        %322 = vmatprep.subr.mxu0 0.0
        %323 = vmatpush1.msra.mxu0 0.0
        %324 = vmatprep.subr.mxu0 0.0
        %325 = vmatpush1.msra.mxu0 0.0
        %326 = vmatprep.subr.mxu0 0.0
        %327 = vmatpush1.msra.mxu0 0.0
        %328 = vmatprep.subr.mxu0 0.0
        %329 = vmatpush1.msra.mxu0 0.0
        %330 = vmatprep.subr.mxu0 0.0
        %331 = vmatpush1.msra.mxu0 0.0
        %332 = vmatprep.subr.mxu0 0.0
        %333 = vmatpush1.msra.mxu0 0.0
        %334 = vmatprep.subr.mxu0 0.0
        %335 = vmatpush1.msra.mxu0 0.0
        %336 = vmatprep.subr.mxu0 0.0
        %337 = vmatpush1.msra.mxu0 0.0
        %338 = vmatprep.subr.mxu0 0.0
        %339 = vmatpush1.msra.mxu0 0.0
        %340 = vmatprep.subr.mxu0 0.0
        %341 = vmatpush1.msra.mxu0 0.0
        %342 = vmatprep.subr.mxu0 0.0
        %343 = vmatpush1.msra.mxu0 0.0
        %344 = vmatprep.subr.mxu0 0.0
        %345 = vmatpush1.msra.mxu0 0.0
        %346 = vmatprep.mubr.f32.mxu0 0.0
        %347 = vmatmul.mubr.f32.gmra.mrb[0].mxu0 %v280
        %v348 = vpop.f32.mrb[0].mxu0
        %v349 = vadd.f32 0.0, %v348
        %v350 = vpop.f32.mrb[0].mxu0
        %351 = vdwg.mxu0
        %v352 = vld [vmem:[%s269] sm:$0x1]
        %v354 = vlaneseq
        %v355 = vshrl.u32 %v354, 7
        %v356 = vsub.s32 0, %v355
        %v357 = vrot.slane %v352, %v356
        %v359 = vmul.f32 %v349, %v357
        %v360 = vld [vmem:[%s272] sm:$0x1]
        %v362 = vlaneseq
        %v363 = vshrl.u32 %v362, 7
        %v364 = vsub.s32 0, %v363
        %v365 = vrot.slane %v360, %v364
        %v367 = vadd.f32 %v359, %v365
        %368 = vst [vmem:[%s266] sm:$0xff] %v367
        %s369 = sand.u32 %s145, 1
        %s370 = scalar_lea.sflag [#allocation4], %s369
        %s371 = sand.u32 %s145, 1
        %s372 = smul.addr %s371, 8
        %s373 = scalar_lea.vmem [#allocation7], %s372
        // Predicated region
        $region45: #{tpu_custom_call.1} parent=35 // pred_check
          %p374 = pneg %p155
        $region46: #{tpu_custom_call.1} parent=35 // pred_check_branch
          %376 = sbr.rel (%p374) target = $region48
        $region47: #{tpu_custom_call.1} parent=35 // pred_region
          %s378 = ssub.s32 128, 128
          %379 = vsyncadd %s370, %s378
          %s380 = sadd.s32 %s27, %s26
          %s381 = smul.addr %s380, 128
          %s382 = scalar_lea.hbm %s4, %s381
          %s384 = sshll.u32 %s373, 4
          %s385 = int_to_ptr.vmem [resolvable:$true] %s384
          %387 = dma.vmem_to_hbm [thread:$0]  %s385, 128, %s382, %s370
        $region48: #{tpu_custom_call.1} parent=35 // pred_fallthru
          _
      $region36: #{tpu_custom_call.1} parent=5 // pred_fallthru
        _
      %p388 = scmp.le.s32.totalorder 2, %s17
      // Predicated region
      $region49: #{tpu_custom_call.1} parent=5 // pred_check
        %p389 = pneg %p388
      $region50: #{tpu_custom_call.1} parent=5 // pred_check_branch
        %391 = sbr.rel (%p389) target = $region52
      $region51: #{tpu_custom_call.1} parent=5 // pred_region
        %s392 = ssub.s32 %s17, 2
        // Predicated region
        $region53: #{tpu_custom_call.1} parent=51 // pred_check
          %p393 = pneg %p161
        $region54: #{tpu_custom_call.1} parent=51 // pred_check_branch
          %395 = sbr.rel (%p393) target = $region56
        $region55: #{tpu_custom_call.1} parent=51 // pred_region
          %s396 = sand.u32 %s146, 1
          %s397 = scalar_lea.sflag [#allocation4], %s396
          %s398 = sand.u32 %s146, 1
          %s399 = smul.addr %s398, 8
          %s400 = scalar_lea.vmem [#allocation7], %s399
          %401 = dma.done %s397, 128
        $region56: #{tpu_custom_call.1} parent=51 // pred_fallthru
          _
      $region52: #{tpu_custom_call.1} parent=5 // pred_fallthru
        _
    $region6: #{tpu_custom_call.1} parent=1 // loop_footer
      %s21 = sadd.s32 1, %s17
    $region7: #{tpu_custom_call.1} parent=1 // loop_footer_branch
      %16 = sbr.rel target = $region3
    $region8: #{tpu_custom_call.1} parent=1 // loop_exit
      _
    %402 = vsyncpa [#allocation3], 1
    %s403 = scalar_lea.sflag [#allocation3], 1
    %404 = vsyncpa %s403, 1
    %405 = vsyncpa [#allocation6], 1
    %406 = vsyncpa [#allocation4], 1
    %s407 = scalar_lea.sflag [#allocation4], 1
    %408 = vsyncpa %s407, 1

</llo_original>
